<compile_context>
chip_gen: v7x
topology: tpu7x:2x2x1
jax: 0.10.0
libtpu: 0.0.40
codegen_flags: <defaults>
</compile_context>

<pallas_src>
import jax
import jax.numpy as jnp
from jax.experimental import pallas as pl
from jax.experimental.pallas import tpu as pltpu


def _swish_kernel(x_ref, o_ref):
    xf = x_ref[...].astype(jnp.float32)
    e = jnp.exp(-xf)                      # EUP
    denom = 1.0 + e
    if o_ref.dtype == jnp.float32:
        # Exact divide: passes 1e-5 tolerance; f32 element rate keeps the
        # VALU Newton-Raphson chain well under budget (still HBM-bound).
        sig = 1.0 / denom
    else:
        # 16-bit outputs: approx reciprocal on the EUP slot is effectively
        # free and its error is below the output rounding anyway.
        sig = pl.reciprocal(denom, approx=True)
    o_ref[...] = (xf * sig).astype(o_ref.dtype)


def _round_up(a: int, b: int) -> int:
    return ((a + b - 1) // b) * b


def _pick_lanes(total: int, max_lanes: int = 2048):
    """Largest multiple of 128 that divides `total` (capped), or None."""
    if total % 128 != 0:
        return None
    best = 128
    k = 256
    while k <= min(total, max_lanes):
        if total % k == 0:
            best = k
        k += 128
    return best


def _default_block_bytes() -> int:
    """Generation-aware block-byte budget (safe default = 2 MiB)."""
    try:
        kind = jax.devices()[0].device_kind.lower()
    except Exception:
        kind = ""
    if "v6" in kind or "v7" in kind:
        return 4 << 20   # v6e/v7x: 32 MiB scoped VMEM -> 4 MiB blocks fine
    return 2 << 20       # v5e (16 MiB scoped) and unknown chips


def swish(x: jax.Array, *, target_block_bytes: int | None = None) -> jax.Array:
    """Elementwise Swish (x * sigmoid(x)), matching the PyTorch reference."""
    orig_shape = x.shape
    orig_dtype = x.dtype
    total = x.size
    if total == 0:
        return x

    if target_block_bytes is None:
        target_block_bytes = _default_block_bytes()

    itemsize = jnp.dtype(orig_dtype).itemsize
    # dtype-aware sublane alignment: 8 (f32), 16 (bf16/f16), 32 (int8/fp8)
    sub = 8 if itemsize >= 4 else (16 if itemsize == 2 else 32)

    # Lane-dense view.  Prefer a divisor of `total` (free reshape, zero extra
    # HBM traffic); fall back to a small pad only for misaligned sizes.
    lanes = _pick_lanes(total)
    needs_pad = lanes is None
    if needs_pad:
        lanes = max(128, min(512, _round_up(total, 128)))
        padded_total = _round_up(total, lanes)
    else:
        padded_total = total
    rows = padded_total // lanes

    # Bytes-budgeted sublane tile, aligned to the sublane multiple.
    tm_budget = max(sub, (target_block_bytes // (lanes * itemsize)) // sub * sub)

    if rows > tm_budget:
        tm = tm_budget
    elif rows >= 4 * sub:
        # Single-budget-block case: split into >= 4 steps so both v7x cores
        # get >= 2 pipelined steps each (neutral on v5e/v6e).
        tm = _round_up(pl.cdiv(rows, 4), sub)
    elif rows >= 2 * sub:
        tm = _round_up(pl.cdiv(rows, 2), sub)
    else:
        tm = rows  # block equals full row extent -> (8,128) rule satisfied

    grid = (pl.cdiv(rows, tm),)   # ragged last block handled by Pallas masking

    flat = x.reshape(-1)
    if needs_pad:
        flat = jnp.pad(flat, (0, padded_total - total))
    x2 = flat.reshape(rows, lanes)

    out = pl.pallas_call(
        _swish_kernel,
        out_shape=jax.ShapeDtypeStruct((rows, lanes), orig_dtype),
        grid_spec=pltpu.PrefetchScalarGridSpec(
            num_scalar_prefetch=0,
            grid=grid,
            in_specs=[pl.BlockSpec((tm, lanes), lambda i: (i, 0))],
            out_specs=pl.BlockSpec((tm, lanes), lambda i: (i, 0)),
        ),
        compiler_params=pltpu.CompilerParams(
            dimension_semantics=("parallel",)),
        cost_estimate=pl.CostEstimate(
            flops=4 * total,
            transcendentals=total,
            bytes_accessed=2 * total * itemsize),
    )(x2)

    if needs_pad:
        return out.reshape(-1)[:total].reshape(orig_shape)
    return out.reshape(orig_shape)


def swish_reference(x):
    # Pure-JAX reference of the PyTorch forward: x.mul(x.sigmoid())
    return x * jax.nn.sigmoid(x)


if __name__ == "__main__":
    key = jax.random.PRNGKey(0)

    # NCHW input consistent with EfficientDet usage: batch=2, channels=4, 16x16.
    # total = 2048 -> lane-dense divisor path, no pad/slice copies.
    x = jax.random.normal(key, (2, 4, 16, 16), dtype=jnp.float32) * 3.0
    y = swish(x)
    jax.block_until_ready(y)
    y_ref = swish_reference(x)
    assert y.shape == x.shape and y.dtype == x.dtype
    assert jnp.allclose(y, y_ref, atol=1e-5, rtol=1e-5), "f32 mismatch"

    # Awkward (non-128-divisible) shape -> exercises the pad fallback path.
    x2 = jax.random.normal(jax.random.PRNGKey(1), (3, 5, 7), dtype=jnp.float32)
    y2 = swish(x2)
    jax.block_until_ready(y2)
    assert jnp.allclose(y2, swish_reference(x2), atol=1e-5, rtol=1e-5), \
        "padded-path mismatch"

    # Mid-size f32 -> multi-step grid with a ragged-capable tiling.
    x3 = jax.random.normal(jax.random.PRNGKey(2), (4, 8, 64, 128),
                           dtype=jnp.float32)
    y3 = swish(x3)
    jax.block_until_ready(y3)
    assert jnp.allclose(y3, swish_reference(x3), atol=1e-5, rtol=1e-5), \
        "multi-step mismatch"

    # bf16 -> exercises the approx-reciprocal (EUP) path.
    x4 = (jax.random.normal(jax.random.PRNGKey(3), (2, 4, 16, 16),
                            dtype=jnp.float32) * 3.0).astype(jnp.bfloat16)
    y4 = swish(x4)
    jax.block_until_ready(y4)
    ref4 = (x4.astype(jnp.float32) * jax.nn.sigmoid(x4.astype(jnp.float32)))
    assert y4.dtype == jnp.bfloat16
    assert jnp.allclose(y4.astype(jnp.float32), ref4, atol=2e-2, rtol=2e-2), \
        "bf16 mismatch"

    print("KERNEL_OK")
</pallas_src>

<mosaic_0001>
module attributes {stable_mosaic.version = 11 : i64} {
  func.func @_swish_kernel(%arg0: i32, %arg1: memref<1x2048xf32, #tpu.memory_space<vmem>>, %arg2: memref<1x2048xf32, #tpu.memory_space<vmem>>) attributes {dimension_semantics = [#tpu.dimension_semantics<parallel>], iteration_bounds = array<i64: 1>, scalar_prefetch = 0 : i64, scratch_operands = 0 : i64, tpu.core_type = #tpu.core_type<tc>, window_params = [{transform_indices = @transform_0, window_bounds = array<i64: 1, 2048>}, {transform_indices = @transform_1, window_bounds = array<i64: 1, 2048>}]} {
    %c0 = arith.constant 0 : index
    %c0_0 = arith.constant 0 : index
    %0 = vector.load %arg1[%c0, %c0_0] : memref<1x2048xf32, #tpu.memory_space<vmem>>, vector<1x2048xf32>
    %cst = arith.constant 0.000000e+00 : f32
    %1 = vector.broadcast %cst : f32 to vector<1x2048xf32>
    %2 = arith.subf %1, %0 : vector<1x2048xf32>
    %3 = math.exp %2 : vector<1x2048xf32>
    %cst_1 = arith.constant 1.000000e+00 : f32
    %4 = vector.broadcast %cst_1 : f32 to vector<1x2048xf32>
    %5 = arith.addf %4, %3 : vector<1x2048xf32>
    %cst_2 = arith.constant 1.000000e+00 : f32
    %6 = vector.broadcast %cst_2 : f32 to vector<1x2048xf32>
    %7 = arith.divf %6, %5 : vector<1x2048xf32>
    %8 = arith.mulf %0, %7 : vector<1x2048xf32>
    %c0_3 = arith.constant 0 : index
    %c0_4 = arith.constant 0 : index
    %9 = vector.load %arg2[%c0_3, %c0_4] : memref<1x2048xf32, #tpu.memory_space<vmem>>, vector<1x2048xf32>
    tpu.vector_store %arg2[%c0_3, %c0_4], %8 {strides = array<i32>} : memref<1x2048xf32, #tpu.memory_space<vmem>>, vector<1x2048xf32>,
    return
  }
  func.func @transform_0(%arg0: i32) -> (i32, i32) {
    %c0_i32 = arith.constant 0 : i32
    %c0_i32_0 = arith.constant 0 : i32
    return %arg0, %c0_i32 : i32, i32
  }
  func.func @transform_1(%arg0: i32) -> (i32, i32) {
    %c0_i32 = arith.constant 0 : i32
    %c0_i32_0 = arith.constant 0 : i32
    return %arg0, %c0_i32 : i32, i32
  }
}

</mosaic_0001>

<llo_original>
// kernel: tpu_custom_call.1
$region0: #{tpu_custom_call.1}
  #allocation0 [shape = 'u32[]', space=smem, size = 0x4, offset = 0x4, fixed_abs, tag = 'smem constant byte address 0x4 - core index']
  #allocation1 [shape = 'u32[144,128]{1,0:T(1,128)}', space=vmem, size = 0x12000, scoped, tag = 'internal scratch']
  %s0 = inlined_call_operand.hbm [shape: f32[1,2048], index: 0, kind: input, shape index: {}]
  %s1 = inlined_call_operand.hbm [shape: f32[1,2048], index: 1, kind: output, shape index: {}]
  %s2 = sld [smem:[#allocation0]]
  $region18: #{tpu_custom_call.1} parent=0
    _
  %s4 = ssub.s32 1, %s2
  %s5 = scalar_select 0, %s4, %s2
  $region1: #{tpu_custom_call.1} parent=0
    #allocation2 [shape = 'u8[8192]{0}', space=vmem, size = 0x2000, scoped, tag = 'input window, operand 0, single buffered']
    #allocation3 [shape = 's32[1]{0}', space=sflag, size = 0x4, scoped, tag = 'scoped memory for tpu_custom_call.1']
    #allocation4 [shape = 's32[1]{0}', space=sflag, size = 0x4, scoped, tag = 'scoped memory for tpu_custom_call.1']
    #allocation5 [shape = 'u8[8192]{0}', space=vmem, size = 0x2000, scoped, tag = 'output window, operand 0, single buffered']
    %6 = vsyncpa [#allocation3], 0
    %7 = vsyncpa [#allocation4], 0
    // Predicated region
    $region2: #{tpu_custom_call.1} parent=1 // pred_check
      _
    $region3: #{tpu_custom_call.1} parent=1 // pred_check_branch
      %9 = sbr.rel (0) target = $region5
    $region4: #{tpu_custom_call.1} parent=1 // pred_region
      %s11 = ssub.s32 256, 256
      %12 = vsyncadd [#allocation3], %s11
      %s14 = sshll.u32 [#allocation2], 4
      %s15 = int_to_ptr.vmem [resolvable:$true] %s14
      %17 = dma.hbm_to_vmem [thread:$0]  %s0, 256, %s15, [#allocation3]
    $region5: #{tpu_custom_call.1} parent=1 // pred_fallthru
      _
    // Predicated region
    $region6: #{tpu_custom_call.1} parent=1 // pred_check
      _
    $region7: #{tpu_custom_call.1} parent=1 // pred_check_branch
      %19 = sbr.rel (0) target = $region9
    $region8: #{tpu_custom_call.1} parent=1 // pred_region
      %20 = dma.done [#allocation3], 256
    $region9: #{tpu_custom_call.1} parent=1 // pred_fallthru
      _
    %v21 = vld [vmem:[#allocation2] sm:$0xff]
    %v22 = vld [vmem:[#allocation2 + $0x8] sm:$0xff]
    %v23 = vsub.f32 0.0, %v21
    %v24 = vsub.f32 0.0, %v22
    %v25 = vmul.f32 %v23, 1.442695
    %v26 = vpow.pop %v25
    %v27 = vmul.f32 %v24, 1.442695
    %v28 = vpow.pop %v27
    %v29 = vadd.f32 %v26, 1.0
    %v30 = vadd.f32 %v28, 1.0
    %v31 = vrcp.pop %v29
    %v32 = vmul.f32 1.0, %v31
    %v33 = vrcp.pop %v30
    %v34 = vmul.f32 1.0, %v33
    %v35 = vmul.f32 %v21, %v32
    %v36 = vmul.f32 %v22, %v34
    %37 = vst [vmem:[#allocation5] sm:$0xff] %v35
    %38 = vst [vmem:[#allocation5 + $0x8] sm:$0xff] %v36
    // Predicated region
    $region10: #{tpu_custom_call.1} parent=1 // pred_check
      _
    $region11: #{tpu_custom_call.1} parent=1 // pred_check_branch
      %40 = sbr.rel (0) target = $region13
    $region12: #{tpu_custom_call.1} parent=1 // pred_region
      %s42 = ssub.s32 256, 256
      %43 = vsyncadd [#allocation4], %s42
      %s45 = sshll.u32 [#allocation5], 4
      %s46 = int_to_ptr.vmem [resolvable:$true] %s45
      %48 = dma.vmem_to_hbm [thread:$0]  %s46, 256, %s1, [#allocation4]
    $region13: #{tpu_custom_call.1} parent=1 // pred_fallthru
      _
    // Predicated region
    $region14: #{tpu_custom_call.1} parent=1 // pred_check
      _
    $region15: #{tpu_custom_call.1} parent=1 // pred_check_branch
      %50 = sbr.rel (0) target = $region17
    $region16: #{tpu_custom_call.1} parent=1 // pred_region
      %51 = dma.done [#allocation4], 256
    $region17: #{tpu_custom_call.1} parent=1 // pred_fallthru
      _
    %52 = vsyncpa [#allocation3], 1
    %53 = vsyncpa [#allocation4], 1

</llo_original>
